<compile_context>
chip_gen: v5e
topology: v5e:2x2
jax: 0.10.0
libtpu: 0.0.40
codegen_flags: <defaults>
</compile_context>

<pallas_src>
import functools

import jax
import jax.numpy as jnp
from jax.experimental import pallas as pl
from jax.experimental.pallas import tpu as pltpu

IN_CH = 768
OUT_CH = 100
KERNEL = 4
STRIDE = 4
N_FLAT = OUT_CH * KERNEL  # 400


def _round_up(x, m):
    return ((x + m - 1) // m) * m


def _choose_tm(m_rows, compute_itemsize, tm_cap=None):
    """Row-tile size: multiple of 8, <= cap, >= 2 (even) grid steps when possible."""
    if tm_cap is None:
        # bf16 path can afford big tiles (v7x per-step overhead amortization);
        # f32 path capped so v5e's 16 MiB scoped-VMEM default is never brushed.
        tm_cap = 2048 if compute_itemsize <= 2 else 512
    tm_cap = max(8, (int(tm_cap) // 8) * 8)
    if m_rows <= 8:
        return 8
    steps = max(2, pl.cdiv(m_rows, tm_cap))
    if steps % 2:  # even step count keeps v7x's two TensorCores balanced
        steps += 1
    tm = _round_up(pl.cdiv(m_rows, steps), 8)
    return max(8, min(tm, tm_cap))


def _mel_head_kernel(x_ref, w_ref, b_ref, o_ref):
    # Cast the activation tile to the MXU compute dtype in VMEM (no separate
    # wrapper-side astype pass over HBM); accumulate in f32 on the MXU.
    x = x_ref[...].astype(w_ref.dtype)
    acc = jnp.dot(x, w_ref[...], preferred_element_type=jnp.float32)
    o_ref[...] = (acc + b_ref[...]).astype(o_ref.dtype)


def prepare_mel_head_params(weight, bias, compute_dtype=jnp.bfloat16):
    """Hoisted once-per-model weight prep (flatten / cast).

    weight: (768, 100, 4) ConvTranspose1d weight (in, out, k); bias: (100,).
    Returns (w_flat, b_row) with w_flat[c, k*100 + o] = weight[c, o, k].
    """
    w_flat = jnp.transpose(weight, (0, 2, 1)).reshape(IN_CH, N_FLAT)
    w_flat = w_flat.astype(compute_dtype)
    b_row = jnp.tile(bias.astype(jnp.float32), KERNEL).reshape(1, N_FLAT)
    return w_flat, b_row


@functools.partial(jax.jit, static_argnames=("out_dtype", "channels_last", "tm_cap"))
def mel_head_apply(x, w_flat, b_row, *, out_dtype=None, channels_last=False,
                   tm_cap=None):
    """Forward given prepared params.

    x: (B, T, 768) in its native dtype (cast happens inside the kernel).
    Returns (B, 100, 4*T) (NCL, module semantics) or (B, 4*T, 100) if
    channels_last=True (zero-copy epilogue).
    """
    B, T, C = x.shape
    assert C == IN_CH
    if out_dtype is None:
        out_dtype = w_flat.dtype  # bf16 compute -> bf16 out by default

    M = B * T
    M8 = _round_up(M, 8)
    tm = _choose_tm(M8, jnp.dtype(w_flat.dtype).itemsize, tm_cap)
    grid = (pl.cdiv(M8, tm),)  # ragged last tile: Pallas boundary masking

    x2d = x.reshape(M, IN_CH)  # no pad, no astype: streamed once by the kernel

    y2d = pl.pallas_call(
        _mel_head_kernel,
        out_shape=jax.ShapeDtypeStruct((M8, N_FLAT), out_dtype),
        grid_spec=pltpu.PrefetchScalarGridSpec(
            num_scalar_prefetch=0,
            grid=grid,
            in_specs=[
                pl.BlockSpec((tm, IN_CH), lambda i: (i, 0)),       # x tile
                pl.BlockSpec((IN_CH, N_FLAT), lambda i: (0, 0)),   # resident W
                pl.BlockSpec((1, N_FLAT), lambda i: (0, 0)),       # resident bias
            ],
            out_specs=pl.BlockSpec((tm, N_FLAT), lambda i: (i, 0)),
        ),
        compiler_params=pltpu.CompilerParams(
            dimension_semantics=("parallel",),
            vmem_limit_bytes=32 * 1024 * 1024,
        ),
    )(x2d, w_flat, b_row)

    if M8 != M:
        y2d = y2d[:M]  # fuses into the epilogue below (no extra HBM pass)

    if channels_last:
        # (M, 400) with column order k*100+o is already (4t+k)-major:
        # channels-last output is a zero-copy reshape -- no transpose pass.
        return y2d.reshape(B, T * KERNEL, OUT_CH)

    # NCL (module semantics): (M,400) -> (B,T,4,100) -> (B,100,T,4) -> (B,100,4T).
    # Done in out_dtype (bf16 by default) inside this jit => one fused pass.
    y = y2d.reshape(B, T, KERNEL, OUT_CH)
    return jnp.transpose(y, (0, 3, 1, 2)).reshape(B, OUT_CH, T * KERNEL)


def mel_head_forward(x, weight, bias, compute_dtype=jnp.bfloat16, out_dtype=None,
                     channels_last=False):
    """Convenience wrapper: prep params (hoistable) + jitted apply."""
    w_flat, b_row = prepare_mel_head_params(weight, bias, compute_dtype)
    return mel_head_apply(x, w_flat, b_row, out_dtype=out_dtype,
                          channels_last=channels_last)


def _reference(x, weight, bias):
    """Pure-JAX f32 reference of ConvTranspose1d(768->100, k=4, s=4)."""
    y = jnp.einsum("btc,cok->botk", x, weight) + bias[None, :, None, None]
    B, O, T, K = y.shape
    return y.reshape(B, O, T * K)


if __name__ == "__main__":
    key = jax.random.PRNGKey(0)
    kx, kw, kb, kx2 = jax.random.split(key, 4)

    # ConvTranspose1d parameter shapes: W (in, out, k), b (out,)
    fan_scale = 1.0 / (IN_CH * KERNEL) ** 0.5
    weight = jax.random.uniform(
        kw, (IN_CH, OUT_CH, KERNEL), jnp.float32, -fan_scale, fan_scale
    )
    bias = jax.random.uniform(kb, (OUT_CH,), jnp.float32, -fan_scale, fan_scale)

    # Case 1: default bf16 compute / bf16 output, NCL layout (B=2, T=8 -> M=16).
    B, T = 2, 8
    x = jax.random.normal(kx, (B, T, IN_CH), dtype=jnp.float32)
    out = jax.block_until_ready(mel_head_forward(x, weight, bias))
    ref = _reference(x, weight, bias)
    assert out.shape == (B, OUT_CH, T * STRIDE), out.shape
    assert out.dtype == jnp.bfloat16, out.dtype
    assert jnp.allclose(out.astype(jnp.float32), ref, atol=3e-2, rtol=3e-2), \
        "bf16 NCL mismatch"

    # Case 2: channels-last output (zero-copy epilogue) on the same inputs.
    out_cl = jax.block_until_ready(
        mel_head_forward(x, weight, bias, channels_last=True)
    )
    assert out_cl.shape == (B, T * STRIDE, OUT_CH), out_cl.shape
    assert jnp.allclose(out_cl.astype(jnp.float32), jnp.transpose(ref, (0, 2, 1)),
                        atol=3e-2, rtol=3e-2), "bf16 channels_last mismatch"

    # Case 3: f32 compute / f32 output with ragged M (B=3, T=7 -> M=21):
    # exercises the boundary-masked last tile (no jnp.pad anywhere).
    B2, T2 = 3, 7
    x2 = jax.random.normal(kx2, (B2, T2, IN_CH), dtype=jnp.float32)
    out2 = jax.block_until_ready(
        mel_head_forward(x2, weight, bias, compute_dtype=jnp.float32)
    )
    ref2 = _reference(x2, weight, bias)
    assert out2.shape == (B2, OUT_CH, T2 * STRIDE), out2.shape
    assert out2.dtype == jnp.float32, out2.dtype
    assert jnp.allclose(out2, ref2, atol=1e-4, rtol=1e-4), "f32 path mismatch"

    print("KERNEL_OK")
</pallas_src>

<mosaic_0001>
module attributes {stable_mosaic.version = 11 : i64} {
  func.func @_mel_head_kernel(%arg0: i32, %arg1: memref<8x768xf32, #tpu.memory_space<vmem>>, %arg2: memref<768x400xbf16, #tpu.memory_space<vmem>>, %arg3: memref<1x400xf32, #tpu.memory_space<vmem>>, %arg4: memref<8x400xbf16, #tpu.memory_space<vmem>>) attributes {dimension_semantics = [#tpu.dimension_semantics<parallel>], iteration_bounds = array<i64: 2>, scalar_prefetch = 0 : i64, scratch_operands = 0 : i64, tpu.core_type = #tpu.core_type<tc>, window_params = [{transform_indices = @transform_0, window_bounds = array<i64: 8, 768>}, {pipeline_mode = #tpu.pipeline_mode<synchronous>, transform_indices = @transform_1, window_bounds = array<i64: 768, 400>}, {pipeline_mode = #tpu.pipeline_mode<synchronous>, transform_indices = @transform_2, window_bounds = array<i64: 1, 400>}, {transform_indices = @transform_3, window_bounds = array<i64: 8, 400>}]} {
    %c0 = arith.constant 0 : index
    %c0_0 = arith.constant 0 : index
    %0 = vector.load %arg1[%c0, %c0_0] : memref<8x768xf32, #tpu.memory_space<vmem>>, vector<8x768xf32>
    %1 = arith.truncf %0 : vector<8x768xf32> to vector<8x768xbf16>
    %c0_1 = arith.constant 0 : index
    %c0_2 = arith.constant 0 : index
    %2 = vector.load %arg2[%c0_1, %c0_2] : memref<768x400xbf16, #tpu.memory_space<vmem>>, vector<768x400xbf16>
    %cst = arith.constant dense<0.000000e+00> : vector<8x400xf32>
    %3 = tpu.matmul %1, %2, %cst {dimension_numbers = #tpu.dot_dimension_numbers<[1], [0], [0], [1], [0, 0, 1, 1], [], []>} : vector<8x768xbf16>, vector<768x400xbf16>, vector<8x400xf32> -> vector<8x400xf32>
    %c0_3 = arith.constant 0 : index
    %c0_4 = arith.constant 0 : index
    %4 = vector.load %arg3[%c0_3, %c0_4] : memref<1x400xf32, #tpu.memory_space<vmem>>, vector<1x400xf32>
    %5 = vector.broadcast %4 : vector<1x400xf32> to vector<8x400xf32>
    %6 = arith.addf %3, %5 : vector<8x400xf32>
    %7 = arith.truncf %6 : vector<8x400xf32> to vector<8x400xbf16>
    %c0_5 = arith.constant 0 : index
    %c0_6 = arith.constant 0 : index
    %8 = vector.load %arg4[%c0_5, %c0_6] : memref<8x400xbf16, #tpu.memory_space<vmem>>, vector<8x400xbf16>
    tpu.vector_store %arg4[%c0_5, %c0_6], %7 {strides = array<i32>} : memref<8x400xbf16, #tpu.memory_space<vmem>>, vector<8x400xbf16>,
    return
  }
  func.func @transform_0(%arg0: i32) -> (i32, i32) {
    %c0_i32 = arith.constant 0 : i32
    %c0_i32_0 = arith.constant 0 : i32
    return %arg0, %c0_i32 : i32, i32
  }
  func.func @transform_1(%arg0: i32) -> (i32, i32) {
    %c0_i32 = arith.constant 0 : i32
    %c0_i32_0 = arith.constant 0 : i32
    %c0_i32_1 = arith.constant 0 : i32
    return %c0_i32, %c0_i32_0 : i32, i32
  }
  func.func @transform_2(%arg0: i32) -> (i32, i32) {
    %c0_i32 = arith.constant 0 : i32
    %c0_i32_0 = arith.constant 0 : i32
    %c0_i32_1 = arith.constant 0 : i32
    return %c0_i32, %c0_i32_0 : i32, i32
  }
  func.func @transform_3(%arg0: i32) -> (i32, i32) {
    %c0_i32 = arith.constant 0 : i32
    %c0_i32_0 = arith.constant 0 : i32
    return %arg0, %c0_i32 : i32, i32
  }
}

</mosaic_0001>

<llo_original>
// kernel: mel_head_apply.1
$region0: #{mel_head_apply.1}
  #allocation0 [shape = 'u32[]', space=smem, size = 0x4, offset = 0x4, fixed_abs, tag = 'smem constant byte address 0x4 - core index']
  #allocation1 [shape = 'u32[72,128]{1,0:T(1,128)}', space=vmem, size = 0x9000, scoped, tag = 'internal scratch']
  %s0 = inlined_call_operand.vmem [shape: f32[16,768], index: 0, kind: input, shape index: {}]
  %s1 = inlined_call_operand.vmem [shape: bf16[768,400], index: 1, kind: input, shape index: {}]
  %s2 = inlined_call_operand.vmem [shape: f32[1,400], index: 2, kind: input, shape index: {}]
  %s3 = inlined_call_operand.vmem [shape: bf16[16,400], index: 3, kind: output, shape index: {}]
  %s4 = sld [smem:[#allocation0]]
  $region45: #{mel_head_apply.1} parent=0
    _
  %s6 = ssub.s32 1, %s4
  %s7 = scalar_select 0, %s6, %s4
  loop: start=0, step=1, limit=4
  $region2: #{mel_head_apply.1} parent=0 // loop_pre_header
    _
  $region3: #{mel_head_apply.1} parent=0 // loop_header
    %s9 = sphi 0, %s13
    %p10 = scmp.ge.s32.totalorder %s9, 4
    %s19 = sphi 0, %s21
    %s22 = sphi 0, %s19
    %s23 = sphi 0, %s22
    %s39 = sphi 0, %s23
    %s43 = sphi 0, %s43
    %s45 = sphi 0, %s43
    %s46 = sphi 0, %s45
    %s60 = sphi 0, %s46
    %s64 = sphi 0, %s64
    %s66 = sphi 0, %s64
    %s67 = sphi 0, %s66
    %s81 = sphi 0, %s67
    %s87 = sphi 0, %s89
    %s90 = sphi 0, %s87
    %s91 = sphi 0, %s90
    %s107 = sphi 0, %s91
  $region4: #{mel_head_apply.1} parent=0 // loop_header_branch
    %12 = sbr.rel (%p10) target = $region8
  $region5: #{mel_head_apply.1} parent=0 // loop_body
    %s14 = ssub.s32 %s9, 1
    %s15 = ssub.s32 %s9, 2
    %s16 = sadd.s32 %s9, 1
    %s17 = ssub.s32 %s9, %s16
    %p18 = scmp.eq.s32.totalorder %s17, 0
    %s20 = sadd.s32 %s19, 1
    %s21 = scalar_select %p18, %s19, %s20
    %p24 = pneg %p18
    %p25 = scmp.eq.s32.totalorder %s9, 1
    %p26 = por %p24, %p25
    %p27 = scmp.ne.s32.totalorder %s19, %s22
    %p28 = scmp.eq.s32.totalorder %s9, 0
    %p29 = por %p27, %p28
    %p30 = scmp.ne.s32.totalorder %s19, %s22
    %p31 = scmp.eq.s32.totalorder %s14, 1
    %p32 = por %p30, %p31
    %p33 = scmp.ne.s32.totalorder %s22, %s23
    %p34 = scmp.eq.s32.totalorder %s14, 0
    %p35 = por %p33, %p34
    %p36 = scmp.ne.s32.totalorder %s22, %s23
    %p37 = scmp.eq.s32.totalorder %s15, 1
    %p38 = por %p36, %p37
    %p40 = scmp.ne.s32.totalorder %s23, %s39
    %p41 = scmp.eq.s32.totalorder %s15, 0
    %p42 = por %p40, %p41
    %s44 = sadd.s32 %s43, 1
    %p47 = scmp.eq.s32.totalorder %s9, 1
    %p48 = scmp.ne.s32.totalorder %s43, %s45
    %p49 = scmp.eq.s32.totalorder %s9, 0
    %p50 = por %p48, %p49
    %p51 = scmp.ne.s32.totalorder %s43, %s45
    %p52 = scmp.eq.s32.totalorder %s14, 1
    %p53 = por %p51, %p52
    %p54 = scmp.ne.s32.totalorder %s45, %s46
    %p55 = scmp.eq.s32.totalorder %s14, 0
    %p56 = por %p54, %p55
    %p57 = scmp.ne.s32.totalorder %s45, %s46
    %p58 = scmp.eq.s32.totalorder %s15, 1
    %p59 = por %p57, %p58
    %p61 = scmp.ne.s32.totalorder %s46, %s60
    %p62 = scmp.eq.s32.totalorder %s15, 0
    %p63 = por %p61, %p62
    %s65 = sadd.s32 %s64, 1
    %p68 = scmp.eq.s32.totalorder %s9, 1
    %p69 = scmp.ne.s32.totalorder %s64, %s66
    %p70 = scmp.eq.s32.totalorder %s9, 0
    %p71 = por %p69, %p70
    %p72 = scmp.ne.s32.totalorder %s64, %s66
    %p73 = scmp.eq.s32.totalorder %s14, 1
    %p74 = por %p72, %p73
    %p75 = scmp.ne.s32.totalorder %s66, %s67
    %p76 = scmp.eq.s32.totalorder %s14, 0
    %p77 = por %p75, %p76
    %p78 = scmp.ne.s32.totalorder %s66, %s67
    %p79 = scmp.eq.s32.totalorder %s15, 1
    %p80 = por %p78, %p79
    %p82 = scmp.ne.s32.totalorder %s67, %s81
    %p83 = scmp.eq.s32.totalorder %s15, 0
    %p84 = por %p82, %p83
    %s85 = ssub.s32 %s9, %s16
    %p86 = scmp.eq.s32.totalorder %s85, 0
    %s88 = sadd.s32 %s87, 1
    %s89 = scalar_select %p86, %s87, %s88
    %p92 = pneg %p86
    %p93 = scmp.eq.s32.totalorder %s9, 1
    %p94 = por %p92, %p93
    %p95 = scmp.ne.s32.totalorder %s87, %s90
    %p96 = scmp.eq.s32.totalorder %s9, 0
    %p97 = por %p95, %p96
    %p98 = scmp.ne.s32.totalorder %s87, %s90
    %p99 = scmp.eq.s32.totalorder %s14, 1
    %p100 = por %p98, %p99
    %p101 = scmp.ne.s32.totalorder %s90, %s91
    %p102 = scmp.eq.s32.totalorder %s14, 0
    %p103 = por %p101, %p102
    %p104 = scmp.ne.s32.totalorder %s90, %s91
    %p105 = scmp.eq.s32.totalorder %s15, 1
    %p106 = por %p104, %p105
    %p108 = scmp.ne.s32.totalorder %s91, %s107
    %p109 = scmp.eq.s32.totalorder %s15, 0
    %p110 = por %p108, %p109
    %p111 = scmp.le.s32.totalorder 1, %s9
    %p112 = scmp.lt.s32.totalorder %s9, 3
    %p113 = pnand %p111, %p112
    %p114 = pneg %p113
    // Predicated region
    $region9: #{mel_head_apply.1} parent=5 // pred_check
      _
    $region10: #{mel_head_apply.1} parent=5 // pred_check_branch
      %116 = sbr.rel (%p113) target = $region12
    $region11: #{mel_head_apply.1} parent=5 // pred_region
      %s117 = ssub.s32 %s9, 1
      // Predicated region
      $region13: #{mel_head_apply.1} parent=11 // pred_check
        %p118 = pneg %p56
      $region14: #{mel_head_apply.1} parent=11 // pred_check_branch
        %120 = sbr.rel (%p118) target = $region16
      $region15: #{mel_head_apply.1} parent=11 // pred_region
        _
      $region16: #{mel_head_apply.1} parent=11 // pred_fallthru
        _
      // Predicated region
      $region17: #{mel_head_apply.1} parent=11 // pred_check
        %p121 = pneg %p77
      $region18: #{mel_head_apply.1} parent=11 // pred_check_branch
        %123 = sbr.rel (%p121) target = $region20
      $region19: #{mel_head_apply.1} parent=11 // pred_region
        _
      $region20: #{mel_head_apply.1} parent=11 // pred_fallthru
        _
    $region12: #{mel_head_apply.1} parent=5 // pred_fallthru
      _
    %p124 = scmp.lt.s32.totalorder %s9, 2
    // Predicated region
    $region21: #{mel_head_apply.1} parent=5 // pred_check
      %p125 = pneg %p124
    $region22: #{mel_head_apply.1} parent=5 // pred_check_branch
      %127 = sbr.rel (%p125) target = $region24
    $region23: #{mel_head_apply.1} parent=5 // pred_region
      // Predicated region
      $region25: #{mel_head_apply.1} parent=23 // pred_check
        %p128 = pneg %p29
      $region26: #{mel_head_apply.1} parent=23 // pred_check_branch
        %130 = sbr.rel (%p128) target = $region28
      $region27: #{mel_head_apply.1} parent=23 // pred_region
        %p131 = scmp.lt.s32.totalorder %s9, 1
        %s132 = scalar_select %p131, %s9, 1
        %s133 = smul.addr %s132, 6
        %s134 = smul.addr %s133, 8
        %s135 = scalar_lea.vmem %s0, %s134
      $region28: #{mel_head_apply.1} parent=23 // pred_fallthru
        _
    $region24: #{mel_head_apply.1} parent=5 // pred_fallthru
      _
    %p136 = scmp.le.s32.totalorder 1, %s9
    %p137 = scmp.lt.s32.totalorder %s9, 3
    %p138 = pnand %p136, %p137
    %p139 = pneg %p138
    // Predicated region
    $region29: #{mel_head_apply.1} parent=5 // pred_check
      _
    $region30: #{mel_head_apply.1} parent=5 // pred_check_branch
      %141 = sbr.rel (%p138) target = $region32
    $region31: #{mel_head_apply.1} parent=5 // pred_region
      %s142 = ssub.s32 %s9, 1
      %p143 = scmp.lt.s32.totalorder %s14, 1
      %s144 = scalar_select %p143, %s14, 1
      %s145 = smul.addr %s144, 6
      %s146 = smul.addr %s145, 8
      %s147 = scalar_lea.vmem %s0, %s146
      %p148 = pneg %p35
      %p149 = pneg %p32
      %p150 = pneg %p56
      %p151 = pneg %p53
      %p152 = pneg %p77
      %p153 = pneg %p74
      %p154 = pneg %p103
      %p155 = pneg %p100
      %p156 = scmp.lt.s32.totalorder %s14, 1
      %s157 = scalar_select %p156, %s14, 1
      %s158 = smul.addr %s157, 4
      %s159 = smul.addr %s158, 4
      %s160 = scalar_lea.vmem %s3, %s159
      %p161 = scmp.lt.s32.totalorder %s14, 1
      %s162 = scalar_select %p161, %s14, 1
      %s163 = smul.addr %s162, 6
      %s164 = smul.addr %s163, 8
      %s165 = scalar_lea.vmem %s0, %s164
      %p166 = scmp.lt.s32.totalorder %s14, 1
      %s167 = scalar_select %p166, %s14, 1
      %s168 = smul.addr %s167, 4
      %s169 = smul.addr %s168, 4
      %s170 = scalar_lea.vmem %s3, %s169
      %v171 = vld [vmem:[%s165] sm:$0xff]
      %v172 = vld [vmem:[%s165 + $0x8] sm:$0xff]
      %v173 = vld [vmem:[%s165 + $0x10] sm:$0xff]
      %v174 = vld [vmem:[%s165 + $0x18] sm:$0xff]
      %v175 = vld [vmem:[%s165 + $0x20] sm:$0xff]
      %v176 = vld [vmem:[%s165 + $0x28] sm:$0xff]
      %v177 = vpack.c.bf16 %v171, %v171
      %v178 = vpack.c.bf16 %v172, %v172
      %v179 = vpack.c.bf16 %v173, %v173
      %v180 = vpack.c.bf16 %v174, %v174
      %v181 = vpack.c.bf16 %v175, %v175
      %v182 = vpack.c.bf16 %v176, %v176
      %v183 = vld [vmem:[%s1] sm:$0xff]
      %v184 = vld [vmem:[%s1 + $0x8] sm:$0xff]
      %v185 = vld [vmem:[%s1 + $0x10] sm:$0xff]
      %v186 = vld [vmem:[%s1 + $0x18] sm:$0xff]
      %v187 = vld [vmem:[%s1 + $0x20] sm:$0xff]
      %v188 = vld [vmem:[%s1 + $0x28] sm:$0xff]
      %v189 = vld [vmem:[%s1 + $0x30] sm:$0xff]
      %v190 = vld [vmem:[%s1 + $0x38] sm:$0xff]
      %v191 = vld [vmem:[%s1 + $0x40] sm:$0xff]
      %v192 = vld [vmem:[%s1 + $0x48] sm:$0xff]
      %v193 = vld [vmem:[%s1 + $0x50] sm:$0xff]
      %v194 = vld [vmem:[%s1 + $0x58] sm:$0xff]
      %v195 = vld [vmem:[%s1 + $0x60] sm:$0xff]
      %v196 = vld [vmem:[%s1 + $0x68] sm:$0xff]
      %v197 = vld [vmem:[%s1 + $0x70] sm:$0xff]
      %v198 = vld [vmem:[%s1 + $0x78] sm:$0xff]
      %v199 = vld [vmem:[%s1 + $0x80] sm:$0xff]
      %v200 = vld [vmem:[%s1 + $0x88] sm:$0xff]
      %v201 = vld [vmem:[%s1 + $0x90] sm:$0xff]
      %v202 = vld [vmem:[%s1 + $0x98] sm:$0xff]
      %v203 = vld [vmem:[%s1 + $0xa0] sm:$0xff]
      %v204 = vld [vmem:[%s1 + $0xa8] sm:$0xff]
      %v205 = vld [vmem:[%s1 + $0xb0] sm:$0xff]
      %v206 = vld [vmem:[%s1 + $0xb8] sm:$0xff]
      %v207 = vld [vmem:[%s1 + $0xc0] sm:$0xff]
      %v208 = vld [vmem:[%s1 + $0xc8] sm:$0xff]
      %v209 = vld [vmem:[%s1 + $0xd0] sm:$0xff]
      %v210 = vld [vmem:[%s1 + $0xd8] sm:$0xff]
      %v211 = vld [vmem:[%s1 + $0xe0] sm:$0xff]
      %v212 = vld [vmem:[%s1 + $0xe8] sm:$0xff]
      %v213 = vld [vmem:[%s1 + $0xf0] sm:$0xff]
      %v214 = vld [vmem:[%s1 + $0xf8] sm:$0xff]
      %v215 = vld [vmem:[%s1 + $0x100] sm:$0xff]
      %v216 = vld [vmem:[%s1 + $0x108] sm:$0xff]
      %v217 = vld [vmem:[%s1 + $0x110] sm:$0xff]
      %v218 = vld [vmem:[%s1 + $0x118] sm:$0xff]
      %v219 = vld [vmem:[%s1 + $0x120] sm:$0xff]
      %v220 = vld [vmem:[%s1 + $0x128] sm:$0xff]
      %v221 = vld [vmem:[%s1 + $0x130] sm:$0xff]
      %v222 = vld [vmem:[%s1 + $0x138] sm:$0xff]
      %v223 = vld [vmem:[%s1 + $0x140] sm:$0xff]
      %v224 = vld [vmem:[%s1 + $0x148] sm:$0xff]
      %v225 = vld [vmem:[%s1 + $0x150] sm:$0xff]
      %v226 = vld [vmem:[%s1 + $0x158] sm:$0xff]
      %v227 = vld [vmem:[%s1 + $0x160] sm:$0xff]
      %v228 = vld [vmem:[%s1 + $0x168] sm:$0xff]
      %v229 = vld [vmem:[%s1 + $0x170] sm:$0xff]
      %v230 = vld [vmem:[%s1 + $0x178] sm:$0xff]
      %v231 = vld [vmem:[%s1 + $0x180] sm:$0xff]
      %v232 = vld [vmem:[%s1 + $0x188] sm:$0xff]
      %v233 = vld [vmem:[%s1 + $0x190] sm:$0xff]
      %v234 = vld [vmem:[%s1 + $0x198] sm:$0xff]
      %v235 = vld [vmem:[%s1 + $0x1a0] sm:$0xff]
      %v236 = vld [vmem:[%s1 + $0x1a8] sm:$0xff]
      %v237 = vld [vmem:[%s1 + $0x1b0] sm:$0xff]
      %v238 = vld [vmem:[%s1 + $0x1b8] sm:$0xff]
      %v239 = vld [vmem:[%s1 + $0x1c0] sm:$0xff]
      %v240 = vld [vmem:[%s1 + $0x1c8] sm:$0xff]
      %v241 = vld [vmem:[%s1 + $0x1d0] sm:$0xff]
      %v242 = vld [vmem:[%s1 + $0x1d8] sm:$0xff]
      %v243 = vld [vmem:[%s1 + $0x1e0] sm:$0xff]
      %v244 = vld [vmem:[%s1 + $0x1e8] sm:$0xff]
      %v245 = vld [vmem:[%s1 + $0x1f0] sm:$0xff]
      %v246 = vld [vmem:[%s1 + $0x1f8] sm:$0xff]
      %v247 = vld [vmem:[%s1 + $0x200] sm:$0xff]
      %v248 = vld [vmem:[%s1 + $0x208] sm:$0xff]
      %v249 = vld [vmem:[%s1 + $0x210] sm:$0xff]
      %v250 = vld [vmem:[%s1 + $0x218] sm:$0xff]
      %v251 = vld [vmem:[%s1 + $0x220] sm:$0xff]
      %v252 = vld [vmem:[%s1 + $0x228] sm:$0xff]
      %v253 = vld [vmem:[%s1 + $0x230] sm:$0xff]
      %v254 = vld [vmem:[%s1 + $0x238] sm:$0xff]
      %v255 = vld [vmem:[%s1 + $0x240] sm:$0xff]
      %v256 = vld [vmem:[%s1 + $0x248] sm:$0xff]
      %v257 = vld [vmem:[%s1 + $0x250] sm:$0xff]
      %v258 = vld [vmem:[%s1 + $0x258] sm:$0xff]
      %v259 = vld [vmem:[%s1 + $0x260] sm:$0xff]
      %v260 = vld [vmem:[%s1 + $0x268] sm:$0xff]
      %v261 = vld [vmem:[%s1 + $0x270] sm:$0xff]
      %v262 = vld [vmem:[%s1 + $0x278] sm:$0xff]
      %v263 = vld [vmem:[%s1 + $0x280] sm:$0xff]
      %v264 = vld [vmem:[%s1 + $0x288] sm:$0xff]
      %v265 = vld [vmem:[%s1 + $0x290] sm:$0xff]
      %v266 = vld [vmem:[%s1 + $0x298] sm:$0xff]
      %v267 = vld [vmem:[%s1 + $0x2a0] sm:$0xff]
      %v268 = vld [vmem:[%s1 + $0x2a8] sm:$0xff]
      %v269 = vld [vmem:[%s1 + $0x2b0] sm:$0xff]
      %v270 = vld [vmem:[%s1 + $0x2b8] sm:$0xff]
      %v271 = vld [vmem:[%s1 + $0x2c0] sm:$0xff]
      %v272 = vld [vmem:[%s1 + $0x2c8] sm:$0xff]
      %v273 = vld [vmem:[%s1 + $0x2d0] sm:$0xff]
      %v274 = vld [vmem:[%s1 + $0x2d8] sm:$0xff]
      %v275 = vld [vmem:[%s1 + $0x2e0] sm:$0xff]
      %v276 = vld [vmem:[%s1 + $0x2e8] sm:$0xff]
      %v277 = vld [vmem:[%s1 + $0x2f0] sm:$0xff]
      %v278 = vld [vmem:[%s1 + $0x2f8] sm:$0xff]
      %v279 = vld [vmem:[%s1 + $0x300] sm:$0xff]
      %v280 = vld [vmem:[%s1 + $0x308] sm:$0xff]
      %v281 = vld [vmem:[%s1 + $0x310] sm:$0xff]
      %v282 = vld [vmem:[%s1 + $0x318] sm:$0xff]
      %v283 = vld [vmem:[%s1 + $0x320] sm:$0xff]
      %v284 = vld [vmem:[%s1 + $0x328] sm:$0xff]
      %v285 = vld [vmem:[%s1 + $0x330] sm:$0xff]
      %v286 = vld [vmem:[%s1 + $0x338] sm:$0xff]
      %v287 = vld [vmem:[%s1 + $0x340] sm:$0xff]
      %v288 = vld [vmem:[%s1 + $0x348] sm:$0xff]
      %v289 = vld [vmem:[%s1 + $0x350] sm:$0xff]
      %v290 = vld [vmem:[%s1 + $0x358] sm:$0xff]
      %v291 = vld [vmem:[%s1 + $0x360] sm:$0xff]
      %v292 = vld [vmem:[%s1 + $0x368] sm:$0xff]
      %v293 = vld [vmem:[%s1 + $0x370] sm:$0xff]
      %v294 = vld [vmem:[%s1 + $0x378] sm:$0xff]
      %v295 = vld [vmem:[%s1 + $0x380] sm:$0xff]
      %v296 = vld [vmem:[%s1 + $0x388] sm:$0xff]
      %v297 = vld [vmem:[%s1 + $0x390] sm:$0xff]
      %v298 = vld [vmem:[%s1 + $0x398] sm:$0xff]
      %v299 = vld [vmem:[%s1 + $0x3a0] sm:$0xff]
      %v300 = vld [vmem:[%s1 + $0x3a8] sm:$0xff]
      %v301 = vld [vmem:[%s1 + $0x3b0] sm:$0xff]
      %v302 = vld [vmem:[%s1 + $0x3b8] sm:$0xff]
      %v303 = vld [vmem:[%s1 + $0x3c0] sm:$0xff]
      %v304 = vld [vmem:[%s1 + $0x3c8] sm:$0xff]
      %v305 = vld [vmem:[%s1 + $0x3d0] sm:$0xff]
      %v306 = vld [vmem:[%s1 + $0x3d8] sm:$0xff]
      %v307 = vld [vmem:[%s1 + $0x3e0] sm:$0xff]
      %v308 = vld [vmem:[%s1 + $0x3e8] sm:$0xff]
      %v309 = vld [vmem:[%s1 + $0x3f0] sm:$0xff]
      %v310 = vld [vmem:[%s1 + $0x3f8] sm:$0xff]
      %v311 = vld [vmem:[%s1 + $0x400] sm:$0xff]
      %v312 = vld [vmem:[%s1 + $0x408] sm:$0xff]
      %v313 = vld [vmem:[%s1 + $0x410] sm:$0xff]
      %v314 = vld [vmem:[%s1 + $0x418] sm:$0xff]
      %v315 = vld [vmem:[%s1 + $0x420] sm:$0xff]
      %v316 = vld [vmem:[%s1 + $0x428] sm:$0xff]
      %v317 = vld [vmem:[%s1 + $0x430] sm:$0xff]
      %v318 = vld [vmem:[%s1 + $0x438] sm:$0xff]
      %v319 = vld [vmem:[%s1 + $0x440] sm:$0xff]
      %v320 = vld [vmem:[%s1 + $0x448] sm:$0xff]
      %v321 = vld [vmem:[%s1 + $0x450] sm:$0xff]
      %v322 = vld [vmem:[%s1 + $0x458] sm:$0xff]
      %v323 = vld [vmem:[%s1 + $0x460] sm:$0xff]
      %v324 = vld [vmem:[%s1 + $0x468] sm:$0xff]
      %v325 = vld [vmem:[%s1 + $0x470] sm:$0xff]
      %v326 = vld [vmem:[%s1 + $0x478] sm:$0xff]
      %v327 = vld [vmem:[%s1 + $0x480] sm:$0xff]
      %v328 = vld [vmem:[%s1 + $0x488] sm:$0xff]
      %v329 = vld [vmem:[%s1 + $0x490] sm:$0xff]
      %v330 = vld [vmem:[%s1 + $0x498] sm:$0xff]
      %v331 = vld [vmem:[%s1 + $0x4a0] sm:$0xff]
      %v332 = vld [vmem:[%s1 + $0x4a8] sm:$0xff]
      %v333 = vld [vmem:[%s1 + $0x4b0] sm:$0xff]
      %v334 = vld [vmem:[%s1 + $0x4b8] sm:$0xff]
      %v335 = vld [vmem:[%s1 + $0x4c0] sm:$0xff]
      %v336 = vld [vmem:[%s1 + $0x4c8] sm:$0xff]
      %v337 = vld [vmem:[%s1 + $0x4d0] sm:$0xff]
      %v338 = vld [vmem:[%s1 + $0x4d8] sm:$0xff]
      %v339 = vld [vmem:[%s1 + $0x4e0] sm:$0xff]
      %v340 = vld [vmem:[%s1 + $0x4e8] sm:$0xff]
      %v341 = vld [vmem:[%s1 + $0x4f0] sm:$0xff]
      %v342 = vld [vmem:[%s1 + $0x4f8] sm:$0xff]
      %v343 = vld [vmem:[%s1 + $0x500] sm:$0xff]
      %v344 = vld [vmem:[%s1 + $0x508] sm:$0xff]
      %v345 = vld [vmem:[%s1 + $0x510] sm:$0xff]
      %v346 = vld [vmem:[%s1 + $0x518] sm:$0xff]
      %v347 = vld [vmem:[%s1 + $0x520] sm:$0xff]
      %v348 = vld [vmem:[%s1 + $0x528] sm:$0xff]
      %v349 = vld [vmem:[%s1 + $0x530] sm:$0xff]
      %v350 = vld [vmem:[%s1 + $0x538] sm:$0xff]
      %v351 = vld [vmem:[%s1 + $0x540] sm:$0xff]
      %v352 = vld [vmem:[%s1 + $0x548] sm:$0xff]
      %v353 = vld [vmem:[%s1 + $0x550] sm:$0xff]
      %v354 = vld [vmem:[%s1 + $0x558] sm:$0xff]
      %v355 = vld [vmem:[%s1 + $0x560] sm:$0xff]
      %v356 = vld [vmem:[%s1 + $0x568] sm:$0xff]
      %v357 = vld [vmem:[%s1 + $0x570] sm:$0xff]
      %v358 = vld [vmem:[%s1 + $0x578] sm:$0xff]
      %v359 = vld [vmem:[%s1 + $0x580] sm:$0xff]
      %v360 = vld [vmem:[%s1 + $0x588] sm:$0xff]
      %v361 = vld [vmem:[%s1 + $0x590] sm:$0xff]
      %v362 = vld [vmem:[%s1 + $0x598] sm:$0xff]
      %v363 = vld [vmem:[%s1 + $0x5a0] sm:$0xff]
      %v364 = vld [vmem:[%s1 + $0x5a8] sm:$0xff]
      %v365 = vld [vmem:[%s1 + $0x5b0] sm:$0xff]
      %v366 = vld [vmem:[%s1 + $0x5b8] sm:$0xff]
      %v367 = vld [vmem:[%s1 + $0x5c0] sm:$0xff]
      %v368 = vld [vmem:[%s1 + $0x5c8] sm:$0xff]
      %v369 = vld [vmem:[%s1 + $0x5d0] sm:$0xff]
      %v370 = vld [vmem:[%s1 + $0x5d8] sm:$0xff]
      %v371 = vld [vmem:[%s1 + $0x5e0] sm:$0xff]
      %v372 = vld [vmem:[%s1 + $0x5e8] sm:$0xff]
      %v373 = vld [vmem:[%s1 + $0x5f0] sm:$0xff]
      %v374 = vld [vmem:[%s1 + $0x5f8] sm:$0xff]
      %v375 = vld [vmem:[%s2] sm:$0xf]
      %v377 = vperm.slane %v375, 0
      %v378 = vperm.slane %v375, 1
      %v379 = vperm.slane %v375, 2
      %v380 = vperm.slane %v375, 3
      %v577 = vunpack.c.l.b16 %v183
      %v578 = vunpack.c.h.b16 %v183
      %v579 = vunpack.c.l.b16 %v184
      %v580 = vunpack.c.h.b16 %v184
      %v581 = vunpack.c.l.b16 %v185
      %v582 = vunpack.c.h.b16 %v185
      %v583 = vunpack.c.l.b16 %v186
      %v584 = vunpack.c.h.b16 %v186
      %v585 = vunpack.c.l.b16 %v187
      %v586 = vunpack.c.h.b16 %v187
      %v587 = vunpack.c.l.b16 %v188
      %v588 = vunpack.c.h.b16 %v188
      %v589 = vunpack.c.l.b16 %v189
      %v590 = vunpack.c.h.b16 %v189
      %v591 = vunpack.c.l.b16 %v190
      %v592 = vunpack.c.h.b16 %v190
      %v593 = vunpack.c.l.b16 %v191
      %v594 = vunpack.c.h.b16 %v191
      %v595 = vunpack.c.l.b16 %v192
      %v596 = vunpack.c.h.b16 %v192
      %v597 = vunpack.c.l.b16 %v193
      %v598 = vunpack.c.h.b16 %v193
      %v599 = vunpack.c.l.b16 %v194
      %v600 = vunpack.c.h.b16 %v194
      %v601 = vunpack.c.l.b16 %v195
      %v602 = vunpack.c.h.b16 %v195
      %v603 = vunpack.c.l.b16 %v196
      %v604 = vunpack.c.h.b16 %v196
      %v605 = vunpack.c.l.b16 %v197
      %v606 = vunpack.c.h.b16 %v197
      %v607 = vunpack.c.l.b16 %v198
      %v608 = vunpack.c.h.b16 %v198
      %v609 = vunpack.c.l.b16 %v199
      %v610 = vunpack.c.h.b16 %v199
      %v611 = vunpack.c.l.b16 %v200
      %v612 = vunpack.c.h.b16 %v200
      %v613 = vunpack.c.l.b16 %v201
      %v614 = vunpack.c.h.b16 %v201
      %v615 = vunpack.c.l.b16 %v202
      %v616 = vunpack.c.h.b16 %v202
      %v617 = vunpack.c.l.b16 %v203
      %v618 = vunpack.c.h.b16 %v203
      %v619 = vunpack.c.l.b16 %v204
      %v620 = vunpack.c.h.b16 %v204
      %v621 = vunpack.c.l.b16 %v205
      %v622 = vunpack.c.h.b16 %v205
      %v623 = vunpack.c.l.b16 %v206
      %v624 = vunpack.c.h.b16 %v206
      %v625 = vunpack.c.l.b16 %v207
      %v626 = vunpack.c.h.b16 %v207
      %v627 = vunpack.c.l.b16 %v208
      %v628 = vunpack.c.h.b16 %v208
      %v629 = vunpack.c.l.b16 %v209
      %v630 = vunpack.c.h.b16 %v209
      %v631 = vunpack.c.l.b16 %v210
      %v632 = vunpack.c.h.b16 %v210
      %v633 = vunpack.c.l.b16 %v211
      %v634 = vunpack.c.h.b16 %v211
      %v635 = vunpack.c.l.b16 %v212
      %v636 = vunpack.c.h.b16 %v212
      %v637 = vunpack.c.l.b16 %v213
      %v638 = vunpack.c.h.b16 %v213
      %v639 = vunpack.c.l.b16 %v214
      %v640 = vunpack.c.h.b16 %v214
      %v641 = vunpack.c.l.b16 %v215
      %v642 = vunpack.c.h.b16 %v215
      %v643 = vunpack.c.l.b16 %v216
      %v644 = vunpack.c.h.b16 %v216
      %v645 = vunpack.c.l.b16 %v217
      %v646 = vunpack.c.h.b16 %v217
      %v647 = vunpack.c.l.b16 %v218
      %v648 = vunpack.c.h.b16 %v218
      %v649 = vunpack.c.l.b16 %v219
      %v650 = vunpack.c.h.b16 %v219
      %v651 = vunpack.c.l.b16 %v220
      %v652 = vunpack.c.h.b16 %v220
      %v653 = vunpack.c.l.b16 %v221
      %v654 = vunpack.c.h.b16 %v221
      %v655 = vunpack.c.l.b16 %v222
      %v656 = vunpack.c.h.b16 %v222
      %v657 = vunpack.c.l.b16 %v223
      %v658 = vunpack.c.h.b16 %v223
      %v659 = vunpack.c.l.b16 %v224
      %v660 = vunpack.c.h.b16 %v224
      %v661 = vunpack.c.l.b16 %v225
      %v662 = vunpack.c.h.b16 %v225
      %v663 = vunpack.c.l.b16 %v226
      %v664 = vunpack.c.h.b16 %v226
      %v665 = vunpack.c.l.b16 %v227
      %v666 = vunpack.c.h.b16 %v227
      %v667 = vunpack.c.l.b16 %v228
      %v668 = vunpack.c.h.b16 %v228
      %v669 = vunpack.c.l.b16 %v229
      %v670 = vunpack.c.h.b16 %v229
      %v671 = vunpack.c.l.b16 %v230
      %v672 = vunpack.c.h.b16 %v230
      %v673 = vunpack.c.l.b16 %v231
      %v674 = vunpack.c.h.b16 %v231
      %v675 = vunpack.c.l.b16 %v232
      %v676 = vunpack.c.h.b16 %v232
      %v677 = vunpack.c.l.b16 %v233
      %v678 = vunpack.c.h.b16 %v233
      %v679 = vunpack.c.l.b16 %v234
      %v680 = vunpack.c.h.b16 %v234
      %v681 = vunpack.c.l.b16 %v235
      %v682 = vunpack.c.h.b16 %v235
      %v683 = vunpack.c.l.b16 %v236
      %v684 = vunpack.c.h.b16 %v236
      %v685 = vunpack.c.l.b16 %v237
      %v686 = vunpack.c.h.b16 %v237
      %v687 = vunpack.c.l.b16 %v238
      %v688 = vunpack.c.h.b16 %v238
      %v689 = vunpack.c.l.b16 %v239
      %v690 = vunpack.c.h.b16 %v239
      %v691 = vunpack.c.l.b16 %v240
      %v692 = vunpack.c.h.b16 %v240
      %v693 = vunpack.c.l.b16 %v241
      %v694 = vunpack.c.h.b16 %v241
      %v695 = vunpack.c.l.b16 %v242
      %v696 = vunpack.c.h.b16 %v242
      %v697 = vunpack.c.l.b16 %v243
      %v698 = vunpack.c.h.b16 %v243
      %v699 = vunpack.c.l.b16 %v244
      %v700 = vunpack.c.h.b16 %v244
      %v701 = vunpack.c.l.b16 %v245
      %v702 = vunpack.c.h.b16 %v245
      %v703 = vunpack.c.l.b16 %v246
      %v704 = vunpack.c.h.b16 %v246
      %v705 = vunpack.c.l.b16 %v247
      %v706 = vunpack.c.h.b16 %v247
      %v707 = vunpack.c.l.b16 %v248
      %v708 = vunpack.c.h.b16 %v248
      %v709 = vunpack.c.l.b16 %v249
      %v710 = vunpack.c.h.b16 %v249
      %v711 = vunpack.c.l.b16 %v250
      %v712 = vunpack.c.h.b16 %v250
      %v713 = vunpack.c.l.b16 %v251
      %v714 = vunpack.c.h.b16 %v251
      %v715 = vunpack.c.l.b16 %v252
      %v716 = vunpack.c.h.b16 %v252
      %v717 = vunpack.c.l.b16 %v253
      %v718 = vunpack.c.h.b16 %v253
      %v719 = vunpack.c.l.b16 %v254
      %v720 = vunpack.c.h.b16 %v254
      %v721 = vunpack.c.l.b16 %v255
      %v722 = vunpack.c.h.b16 %v255
      %v723 = vunpack.c.l.b16 %v256
      %v724 = vunpack.c.h.b16 %v256
      %v725 = vunpack.c.l.b16 %v257
      %v726 = vunpack.c.h.b16 %v257
      %v727 = vunpack.c.l.b16 %v258
      %v728 = vunpack.c.h.b16 %v258
      %v729 = vunpack.c.l.b16 %v259
      %v730 = vunpack.c.h.b16 %v259
      %v731 = vunpack.c.l.b16 %v260
      %v732 = vunpack.c.h.b16 %v260
      %v733 = vunpack.c.l.b16 %v261
      %v734 = vunpack.c.h.b16 %v261
      %v735 = vunpack.c.l.b16 %v262
      %v736 = vunpack.c.h.b16 %v262
      %v737 = vunpack.c.l.b16 %v263
      %v738 = vunpack.c.h.b16 %v263
      %v739 = vunpack.c.l.b16 %v264
      %v740 = vunpack.c.h.b16 %v264
      %v741 = vunpack.c.l.b16 %v265
      %v742 = vunpack.c.h.b16 %v265
      %v743 = vunpack.c.l.b16 %v266
      %v744 = vunpack.c.h.b16 %v266
      %v745 = vunpack.c.l.b16 %v267
      %v746 = vunpack.c.h.b16 %v267
      %v747 = vunpack.c.l.b16 %v268
      %v748 = vunpack.c.h.b16 %v268
      %v749 = vunpack.c.l.b16 %v269
      %v750 = vunpack.c.h.b16 %v269
      %v751 = vunpack.c.l.b16 %v270
      %v752 = vunpack.c.h.b16 %v270
      %v753 = vunpack.c.l.b16 %v271
      %v754 = vunpack.c.h.b16 %v271
      %v755 = vunpack.c.l.b16 %v272
      %v756 = vunpack.c.h.b16 %v272
      %v757 = vunpack.c.l.b16 %v273
      %v758 = vunpack.c.h.b16 %v273
      %v759 = vunpack.c.l.b16 %v274
      %v760 = vunpack.c.h.b16 %v274
      %v761 = vunpack.c.l.b16 %v275
      %v762 = vunpack.c.h.b16 %v275
      %v763 = vunpack.c.l.b16 %v276
      %v764 = vunpack.c.h.b16 %v276
      %v765 = vunpack.c.l.b16 %v277
      %v766 = vunpack.c.h.b16 %v277
      %v767 = vunpack.c.l.b16 %v278
      %v768 = vunpack.c.h.b16 %v278
      %v769 = vunpack.c.l.b16 %v279
      %v770 = vunpack.c.h.b16 %v279
      %v771 = vunpack.c.l.b16 %v280
      %v772 = vunpack.c.h.b16 %v280
      %v773 = vunpack.c.l.b16 %v281
      %v774 = vunpack.c.h.b16 %v281
      %v775 = vunpack.c.l.b16 %v282
      %v776 = vunpack.c.h.b16 %v282
      %v777 = vunpack.c.l.b16 %v283
      %v778 = vunpack.c.h.b16 %v283
      %v779 = vunpack.c.l.b16 %v284
      %v780 = vunpack.c.h.b16 %v284
      %v781 = vunpack.c.l.b16 %v285
      %v782 = vunpack.c.h.b16 %v285
      %v783 = vunpack.c.l.b16 %v286
      %v784 = vunpack.c.h.b16 %v286
      %v785 = vunpack.c.l.b16 %v287
      %v786 = vunpack.c.h.b16 %v287
      %v787 = vunpack.c.l.b16 %v288
      %v788 = vunpack.c.h.b16 %v288
      %v789 = vunpack.c.l.b16 %v289
      %v790 = vunpack.c.h.b16 %v289
      %v791 = vunpack.c.l.b16 %v290
      %v792 = vunpack.c.h.b16 %v290
      %v793 = vunpack.c.l.b16 %v291
      %v794 = vunpack.c.h.b16 %v291
      %v795 = vunpack.c.l.b16 %v292
      %v796 = vunpack.c.h.b16 %v292
      %v797 = vunpack.c.l.b16 %v293
      %v798 = vunpack.c.h.b16 %v293
      %v799 = vunpack.c.l.b16 %v294
      %v800 = vunpack.c.h.b16 %v294
      %v801 = vunpack.c.l.b16 %v295
      %v802 = vunpack.c.h.b16 %v295
      %v803 = vunpack.c.l.b16 %v296
      %v804 = vunpack.c.h.b16 %v296
      %v805 = vunpack.c.l.b16 %v297
      %v806 = vunpack.c.h.b16 %v297
      %v807 = vunpack.c.l.b16 %v298
      %v808 = vunpack.c.h.b16 %v298
      %v809 = vunpack.c.l.b16 %v299
      %v810 = vunpack.c.h.b16 %v299
      %v811 = vunpack.c.l.b16 %v300
      %v812 = vunpack.c.h.b16 %v300
      %v813 = vunpack.c.l.b16 %v301
      %v814 = vunpack.c.h.b16 %v301
      %v815 = vunpack.c.l.b16 %v302
      %v816 = vunpack.c.h.b16 %v302
      %v817 = vunpack.c.l.b16 %v303
      %v818 = vunpack.c.h.b16 %v303
      %v819 = vunpack.c.l.b16 %v304
      %v820 = vunpack.c.h.b16 %v304
      %v821 = vunpack.c.l.b16 %v305
      %v822 = vunpack.c.h.b16 %v305
      %v823 = vunpack.c.l.b16 %v306
      %v824 = vunpack.c.h.b16 %v306
      %v825 = vunpack.c.l.b16 %v307
      %v826 = vunpack.c.h.b16 %v307
      %v827 = vunpack.c.l.b16 %v308
      %v828 = vunpack.c.h.b16 %v308
      %v829 = vunpack.c.l.b16 %v309
      %v830 = vunpack.c.h.b16 %v309
      %v831 = vunpack.c.l.b16 %v310
      %v832 = vunpack.c.h.b16 %v310
      %v833 = vunpack.c.l.b16 %v311
      %v834 = vunpack.c.h.b16 %v311
      %v835 = vunpack.c.l.b16 %v312
      %v836 = vunpack.c.h.b16 %v312
      %v837 = vunpack.c.l.b16 %v313
      %v838 = vunpack.c.h.b16 %v313
      %v839 = vunpack.c.l.b16 %v314
      %v840 = vunpack.c.h.b16 %v314
      %v841 = vunpack.c.l.b16 %v315
      %v842 = vunpack.c.h.b16 %v315
      %v843 = vunpack.c.l.b16 %v316
      %v844 = vunpack.c.h.b16 %v316
      %v845 = vunpack.c.l.b16 %v317
      %v846 = vunpack.c.h.b16 %v317
      %v847 = vunpack.c.l.b16 %v318
      %v848 = vunpack.c.h.b16 %v318
      %v849 = vunpack.c.l.b16 %v319
      %v850 = vunpack.c.h.b16 %v319
      %v851 = vunpack.c.l.b16 %v320
      %v852 = vunpack.c.h.b16 %v320
      %v853 = vunpack.c.l.b16 %v321
      %v854 = vunpack.c.h.b16 %v321
      %v855 = vunpack.c.l.b16 %v322
      %v856 = vunpack.c.h.b16 %v322
      %v857 = vunpack.c.l.b16 %v323
      %v858 = vunpack.c.h.b16 %v323
      %v859 = vunpack.c.l.b16 %v324
      %v860 = vunpack.c.h.b16 %v324
      %v861 = vunpack.c.l.b16 %v325
      %v862 = vunpack.c.h.b16 %v325
      %v863 = vunpack.c.l.b16 %v326
      %v864 = vunpack.c.h.b16 %v326
      %v865 = vunpack.c.l.b16 %v327
      %v866 = vunpack.c.h.b16 %v327
      %v867 = vunpack.c.l.b16 %v328
      %v868 = vunpack.c.h.b16 %v328
      %v869 = vunpack.c.l.b16 %v329
      %v870 = vunpack.c.h.b16 %v329
      %v871 = vunpack.c.l.b16 %v330
      %v872 = vunpack.c.h.b16 %v330
      %v873 = vunpack.c.l.b16 %v331
      %v874 = vunpack.c.h.b16 %v331
      %v875 = vunpack.c.l.b16 %v332
      %v876 = vunpack.c.h.b16 %v332
      %v877 = vunpack.c.l.b16 %v333
      %v878 = vunpack.c.h.b16 %v333
      %v879 = vunpack.c.l.b16 %v334
      %v880 = vunpack.c.h.b16 %v334
      %v881 = vunpack.c.l.b16 %v335
      %v882 = vunpack.c.h.b16 %v335
      %v883 = vunpack.c.l.b16 %v336
      %v884 = vunpack.c.h.b16 %v336
      %v885 = vunpack.c.l.b16 %v337
      %v886 = vunpack.c.h.b16 %v337
      %v887 = vunpack.c.l.b16 %v338
      %v888 = vunpack.c.h.b16 %v338
      %v889 = vunpack.c.l.b16 %v339
      %v890 = vunpack.c.h.b16 %v339
      %v891 = vunpack.c.l.b16 %v340
      %v892 = vunpack.c.h.b16 %v340
      %v893 = vunpack.c.l.b16 %v341
      %v894 = vunpack.c.h.b16 %v341
      %v895 = vunpack.c.l.b16 %v342
      %v896 = vunpack.c.h.b16 %v342
      %v897 = vunpack.c.l.b16 %v343
      %v898 = vunpack.c.h.b16 %v343
      %v899 = vunpack.c.l.b16 %v344
      %v900 = vunpack.c.h.b16 %v344
      %v901 = vunpack.c.l.b16 %v345
      %v902 = vunpack.c.h.b16 %v345
      %v903 = vunpack.c.l.b16 %v346
      %v904 = vunpack.c.h.b16 %v346
      %v905 = vunpack.c.l.b16 %v347
      %v906 = vunpack.c.h.b16 %v347
      %v907 = vunpack.c.l.b16 %v348
      %v908 = vunpack.c.h.b16 %v348
      %v909 = vunpack.c.l.b16 %v349
      %v910 = vunpack.c.h.b16 %v349
      %v911 = vunpack.c.l.b16 %v350
      %v912 = vunpack.c.h.b16 %v350
      %v913 = vunpack.c.l.b16 %v351
      %v914 = vunpack.c.h.b16 %v351
      %v915 = vunpack.c.l.b16 %v352
      %v916 = vunpack.c.h.b16 %v352
      %v917 = vunpack.c.l.b16 %v353
      %v918 = vunpack.c.h.b16 %v353
      %v919 = vunpack.c.l.b16 %v354
      %v920 = vunpack.c.h.b16 %v354
      %v921 = vunpack.c.l.b16 %v355
      %v922 = vunpack.c.h.b16 %v355
      %v923 = vunpack.c.l.b16 %v356
      %v924 = vunpack.c.h.b16 %v356
      %v925 = vunpack.c.l.b16 %v357
      %v926 = vunpack.c.h.b16 %v357
      %v927 = vunpack.c.l.b16 %v358
      %v928 = vunpack.c.h.b16 %v358
      %v929 = vunpack.c.l.b16 %v359
      %v930 = vunpack.c.h.b16 %v359
      %v931 = vunpack.c.l.b16 %v360
      %v932 = vunpack.c.h.b16 %v360
      %v933 = vunpack.c.l.b16 %v361
      %v934 = vunpack.c.h.b16 %v361
      %v935 = vunpack.c.l.b16 %v362
      %v936 = vunpack.c.h.b16 %v362
      %v937 = vunpack.c.l.b16 %v363
      %v938 = vunpack.c.h.b16 %v363
      %v939 = vunpack.c.l.b16 %v364
      %v940 = vunpack.c.h.b16 %v364
      %v941 = vunpack.c.l.b16 %v365
      %v942 = vunpack.c.h.b16 %v365
      %v943 = vunpack.c.l.b16 %v366
      %v944 = vunpack.c.h.b16 %v366
      %v945 = vunpack.c.l.b16 %v367
      %v946 = vunpack.c.h.b16 %v367
      %v947 = vunpack.c.l.b16 %v368
      %v948 = vunpack.c.h.b16 %v368
      %v949 = vunpack.c.l.b16 %v369
      %v950 = vunpack.c.h.b16 %v369
      %v951 = vunpack.c.l.b16 %v370
      %v952 = vunpack.c.h.b16 %v370
      %v953 = vunpack.c.l.b16 %v371
      %v954 = vunpack.c.h.b16 %v371
      %v955 = vunpack.c.l.b16 %v372
      %v956 = vunpack.c.h.b16 %v372
      %v957 = vunpack.c.l.b16 %v373
      %v958 = vunpack.c.h.b16 %v373
      %v959 = vunpack.c.l.b16 %v374
      %v960 = vunpack.c.h.b16 %v374
      %v961 = vpack.c.b16 %v581, %v577
      %v962 = vpack.c.b16 %v582, %v578
      %v963 = vpack.c.b16 %v583, %v579
      %v964 = vpack.c.b16 %v584, %v580
      %v965 = vpack.c.b16 %v589, %v585
      %v966 = vpack.c.b16 %v590, %v586
      %v967 = vpack.c.b16 %v591, %v587
      %v968 = vpack.c.b16 %v592, %v588
      %v969 = vpack.c.b16 %v597, %v593
      %v970 = vpack.c.b16 %v598, %v594
      %v971 = vpack.c.b16 %v599, %v595
      %v972 = vpack.c.b16 %v600, %v596
      %v973 = vpack.c.b16 %v605, %v601
      %v974 = vpack.c.b16 %v606, %v602
      %v975 = vpack.c.b16 %v607, %v603
      %v976 = vpack.c.b16 %v608, %v604
      %v977 = vpack.c.b16 %v613, %v609
      %v978 = vpack.c.b16 %v614, %v610
      %v979 = vpack.c.b16 %v615, %v611
      %v980 = vpack.c.b16 %v616, %v612
      %v981 = vpack.c.b16 %v621, %v617
      %v982 = vpack.c.b16 %v622, %v618
      %v983 = vpack.c.b16 %v623, %v619
      %v984 = vpack.c.b16 %v624, %v620
      %v985 = vpack.c.b16 %v629, %v625
      %v986 = vpack.c.b16 %v630, %v626
      %v987 = vpack.c.b16 %v631, %v627
      %v988 = vpack.c.b16 %v632, %v628
      %v989 = vpack.c.b16 %v637, %v633
      %v990 = vpack.c.b16 %v638, %v634
      %v991 = vpack.c.b16 %v639, %v635
      %v992 = vpack.c.b16 %v640, %v636
      %v993 = vpack.c.b16 %v645, %v641
      %v994 = vpack.c.b16 %v646, %v642
      %v995 = vpack.c.b16 %v647, %v643
      %v996 = vpack.c.b16 %v648, %v644
      %v997 = vpack.c.b16 %v653, %v649
      %v998 = vpack.c.b16 %v654, %v650
      %v999 = vpack.c.b16 %v655, %v651
      %v1000 = vpack.c.b16 %v656, %v652
      %v1001 = vpack.c.b16 %v661, %v657
      %v1002 = vpack.c.b16 %v662, %v658
      %v1003 = vpack.c.b16 %v663, %v659
      %v1004 = vpack.c.b16 %v664, %v660
      %v1005 = vpack.c.b16 %v669, %v665
      %v1006 = vpack.c.b16 %v670, %v666
      %v1007 = vpack.c.b16 %v671, %v667
      %v1008 = vpack.c.b16 %v672, %v668
      %v1009 = vpack.c.b16 %v677, %v673
      %v1010 = vpack.c.b16 %v678, %v674
      %v1011 = vpack.c.b16 %v679, %v675
      %v1012 = vpack.c.b16 %v680, %v676
      %v1013 = vpack.c.b16 %v685, %v681
      %v1014 = vpack.c.b16 %v686, %v682
      %v1015 = vpack.c.b16 %v687, %v683
      %v1016 = vpack.c.b16 %v688, %v684
      %v1017 = vpack.c.b16 %v693, %v689
      %v1018 = vpack.c.b16 %v694, %v690
      %v1019 = vpack.c.b16 %v695, %v691
      %v1020 = vpack.c.b16 %v696, %v692
      %v1021 = vpack.c.b16 %v701, %v697
      %v1022 = vpack.c.b16 %v702, %v698
      %v1023 = vpack.c.b16 %v703, %v699
      %v1024 = vpack.c.b16 %v704, %v700
      %v1025 = vpack.c.b16 %v709, %v705
      %v1026 = vpack.c.b16 %v710, %v706
      %v1027 = vpack.c.b16 %v711, %v707
      %v1028 = vpack.c.b16 %v712, %v708
      %v1029 = vpack.c.b16 %v717, %v713
      %v1030 = vpack.c.b16 %v718, %v714
      %v1031 = vpack.c.b16 %v719, %v715
      %v1032 = vpack.c.b16 %v720, %v716
      %v1033 = vpack.c.b16 %v725, %v721
      %v1034 = vpack.c.b16 %v726, %v722
      %v1035 = vpack.c.b16 %v727, %v723
      %v1036 = vpack.c.b16 %v728, %v724
      %v1037 = vpack.c.b16 %v733, %v729
      %v1038 = vpack.c.b16 %v734, %v730
      %v1039 = vpack.c.b16 %v735, %v731
      %v1040 = vpack.c.b16 %v736, %v732
      %v1041 = vpack.c.b16 %v741, %v737
      %v1042 = vpack.c.b16 %v742, %v738
      %v1043 = vpack.c.b16 %v743, %v739
      %v1044 = vpack.c.b16 %v744, %v740
      %v1045 = vpack.c.b16 %v749, %v745
      %v1046 = vpack.c.b16 %v750, %v746
      %v1047 = vpack.c.b16 %v751, %v747
      %v1048 = vpack.c.b16 %v752, %v748
      %v1049 = vpack.c.b16 %v757, %v753
      %v1050 = vpack.c.b16 %v758, %v754
      %v1051 = vpack.c.b16 %v759, %v755
      %v1052 = vpack.c.b16 %v760, %v756
      %v1053 = vpack.c.b16 %v765, %v761
      %v1054 = vpack.c.b16 %v766, %v762
      %v1055 = vpack.c.b16 %v767, %v763
      %v1056 = vpack.c.b16 %v768, %v764
      %v1057 = vpack.c.b16 %v773, %v769
      %v1058 = vpack.c.b16 %v774, %v770
      %v1059 = vpack.c.b16 %v775, %v771
      %v1060 = vpack.c.b16 %v776, %v772
      %v1061 = vpack.c.b16 %v781, %v777
      %v1062 = vpack.c.b16 %v782, %v778
      %v1063 = vpack.c.b16 %v783, %v779
      %v1064 = vpack.c.b16 %v784, %v780
      %v1065 = vpack.c.b16 %v789, %v785
      %v1066 = vpack.c.b16 %v790, %v786
      %v1067 = vpack.c.b16 %v791, %v787
      %v1068 = vpack.c.b16 %v792, %v788
      %v1069 = vpack.c.b16 %v797, %v793
      %v1070 = vpack.c.b16 %v798, %v794
      %v1071 = vpack.c.b16 %v799, %v795
      %v1072 = vpack.c.b16 %v800, %v796
      %v1073 = vpack.c.b16 %v805, %v801
      %v1074 = vpack.c.b16 %v806, %v802
      %v1075 = vpack.c.b16 %v807, %v803
      %v1076 = vpack.c.b16 %v808, %v804
      %v1077 = vpack.c.b16 %v813, %v809
      %v1078 = vpack.c.b16 %v814, %v810
      %v1079 = vpack.c.b16 %v815, %v811
      %v1080 = vpack.c.b16 %v816, %v812
      %v1081 = vpack.c.b16 %v821, %v817
      %v1082 = vpack.c.b16 %v822, %v818
      %v1083 = vpack.c.b16 %v823, %v819
      %v1084 = vpack.c.b16 %v824, %v820
      %v1085 = vpack.c.b16 %v829, %v825
      %v1086 = vpack.c.b16 %v830, %v826
      %v1087 = vpack.c.b16 %v831, %v827
      %v1088 = vpack.c.b16 %v832, %v828
      %v1089 = vpack.c.b16 %v837, %v833
      %v1090 = vpack.c.b16 %v838, %v834
      %v1091 = vpack.c.b16 %v839, %v835
      %v1092 = vpack.c.b16 %v840, %v836
      %v1093 = vpack.c.b16 %v845, %v841
      %v1094 = vpack.c.b16 %v846, %v842
      %v1095 = vpack.c.b16 %v847, %v843
      %v1096 = vpack.c.b16 %v848, %v844
      %v1097 = vpack.c.b16 %v853, %v849
      %v1098 = vpack.c.b16 %v854, %v850
      %v1099 = vpack.c.b16 %v855, %v851
      %v1100 = vpack.c.b16 %v856, %v852
      %v1101 = vpack.c.b16 %v861, %v857
      %v1102 = vpack.c.b16 %v862, %v858
      %v1103 = vpack.c.b16 %v863, %v859
      %v1104 = vpack.c.b16 %v864, %v860
      %v1105 = vpack.c.b16 %v869, %v865
      %v1106 = vpack.c.b16 %v870, %v866
      %v1107 = vpack.c.b16 %v871, %v867
      %v1108 = vpack.c.b16 %v872, %v868
      %v1109 = vpack.c.b16 %v877, %v873
      %v1110 = vpack.c.b16 %v878, %v874
      %v1111 = vpack.c.b16 %v879, %v875
      %v1112 = vpack.c.b16 %v880, %v876
      %v1113 = vpack.c.b16 %v885, %v881
      %v1114 = vpack.c.b16 %v886, %v882
      %v1115 = vpack.c.b16 %v887, %v883
      %v1116 = vpack.c.b16 %v888, %v884
      %v1117 = vpack.c.b16 %v893, %v889
      %v1118 = vpack.c.b16 %v894, %v890
      %v1119 = vpack.c.b16 %v895, %v891
      %v1120 = vpack.c.b16 %v896, %v892
      %v1121 = vpack.c.b16 %v901, %v897
      %v1122 = vpack.c.b16 %v902, %v898
      %v1123 = vpack.c.b16 %v903, %v899
      %v1124 = vpack.c.b16 %v904, %v900
      %v1125 = vpack.c.b16 %v909, %v905
      %v1126 = vpack.c.b16 %v910, %v906
      %v1127 = vpack.c.b16 %v911, %v907
      %v1128 = vpack.c.b16 %v912, %v908
      %v1129 = vpack.c.b16 %v917, %v913
      %v1130 = vpack.c.b16 %v918, %v914
      %v1131 = vpack.c.b16 %v919, %v915
      %v1132 = vpack.c.b16 %v920, %v916
      %v1133 = vpack.c.b16 %v925, %v921
      %v1134 = vpack.c.b16 %v926, %v922
      %v1135 = vpack.c.b16 %v927, %v923
      %v1136 = vpack.c.b16 %v928, %v924
      %v1137 = vpack.c.b16 %v933, %v929
      %v1138 = vpack.c.b16 %v934, %v930
      %v1139 = vpack.c.b16 %v935, %v931
      %v1140 = vpack.c.b16 %v936, %v932
      %v1141 = vpack.c.b16 %v941, %v937
      %v1142 = vpack.c.b16 %v942, %v938
      %v1143 = vpack.c.b16 %v943, %v939
      %v1144 = vpack.c.b16 %v944, %v940
      %v1145 = vpack.c.b16 %v949, %v945
      %v1146 = vpack.c.b16 %v950, %v946
      %v1147 = vpack.c.b16 %v951, %v947
      %v1148 = vpack.c.b16 %v952, %v948
      %v1149 = vpack.c.b16 %v957, %v953
      %v1150 = vpack.c.b16 %v958, %v954
      %v1151 = vpack.c.b16 %v959, %v955
      %v1152 = vpack.c.b16 %v960, %v956
      %1345 = vmatpush.bf16.msra.mxu0 %v989
      %1346 = vmatpush.bf16.msra.mxu0 %v985
      %1347 = vmatpush.bf16.msra.mxu0 %v981
      %1348 = vmatpush.bf16.msra.mxu0 %v977
      %1349 = vmatpush.bf16.msra.mxu0 %v973
      %1350 = vmatpush.bf16.msra.mxu0 %v969
      %1351 = vmatpush.bf16.msra.mxu0 %v965
      %1352 = vmatpush.bf16.msra.mxu0 %v961
      %1353 = vmatmul.bf16.gmra.mxu0 %v177
      %v1354 = vpop.f32.mrf.mxu0
      %v1355 = vadd.f32 %v377, %v1354
      %v1356 = vpop.f32.mrf.mxu0
      %1357 = vdwg.mxu0
      %1358 = vmatpush.bf16.msra.mxu0 %v1021
      %1359 = vmatpush.bf16.msra.mxu0 %v1017
      %1360 = vmatpush.bf16.msra.mxu0 %v1013
      %1361 = vmatpush.bf16.msra.mxu0 %v1009
      %1362 = vmatpush.bf16.msra.mxu0 %v1005
      %1363 = vmatpush.bf16.msra.mxu0 %v1001
      %1364 = vmatpush.bf16.msra.mxu0 %v997
      %1365 = vmatpush.bf16.msra.mxu0 %v993
      %1366 = vmatmul.bf16.gmra.mxu0 %v178
      %v1367 = vpop.f32.mrf.mxu0
      %v1368 = vadd.f32 %v1355, %v1367
      %v1369 = vpop.f32.mrf.mxu0
      %1370 = vdwg.mxu0
      %1371 = vmatpush.bf16.msra.mxu0 %v1053
      %1372 = vmatpush.bf16.msra.mxu0 %v1049
      %1373 = vmatpush.bf16.msra.mxu0 %v1045
      %1374 = vmatpush.bf16.msra.mxu0 %v1041
      %1375 = vmatpush.bf16.msra.mxu0 %v1037
      %1376 = vmatpush.bf16.msra.mxu0 %v1033
      %1377 = vmatpush.bf16.msra.mxu0 %v1029
      %1378 = vmatpush.bf16.msra.mxu0 %v1025
      %1379 = vmatmul.bf16.gmra.mxu0 %v179
      %v1380 = vpop.f32.mrf.mxu0
      %v1381 = vadd.f32 %v1368, %v1380
      %v1382 = vpop.f32.mrf.mxu0
      %1383 = vdwg.mxu0
      %1384 = vmatpush.bf16.msra.mxu0 %v1085
      %1385 = vmatpush.bf16.msra.mxu0 %v1081
      %1386 = vmatpush.bf16.msra.mxu0 %v1077
      %1387 = vmatpush.bf16.msra.mxu0 %v1073
      %1388 = vmatpush.bf16.msra.mxu0 %v1069
      %1389 = vmatpush.bf16.msra.mxu0 %v1065
      %1390 = vmatpush.bf16.msra.mxu0 %v1061
      %1391 = vmatpush.bf16.msra.mxu0 %v1057
      %1392 = vmatmul.bf16.gmra.mxu0 %v180
      %v1393 = vpop.f32.mrf.mxu0
      %v1394 = vadd.f32 %v1381, %v1393
      %v1395 = vpop.f32.mrf.mxu0
      %1396 = vdwg.mxu0
      %1397 = vmatpush.bf16.msra.mxu0 %v1117
      %1398 = vmatpush.bf16.msra.mxu0 %v1113
      %1399 = vmatpush.bf16.msra.mxu0 %v1109
      %1400 = vmatpush.bf16.msra.mxu0 %v1105
      %1401 = vmatpush.bf16.msra.mxu0 %v1101
      %1402 = vmatpush.bf16.msra.mxu0 %v1097
      %1403 = vmatpush.bf16.msra.mxu0 %v1093
      %1404 = vmatpush.bf16.msra.mxu0 %v1089
      %1405 = vmatmul.bf16.gmra.mxu0 %v181
      %v1406 = vpop.f32.mrf.mxu0
      %v1407 = vadd.f32 %v1394, %v1406
      %v1408 = vpop.f32.mrf.mxu0
      %1409 = vdwg.mxu0
      %1410 = vmatpush.bf16.msra.mxu0 %v1149
      %1411 = vmatpush.bf16.msra.mxu0 %v1145
      %1412 = vmatpush.bf16.msra.mxu0 %v1141
      %1413 = vmatpush.bf16.msra.mxu0 %v1137
      %1414 = vmatpush.bf16.msra.mxu0 %v1133
      %1415 = vmatpush.bf16.msra.mxu0 %v1129
      %1416 = vmatpush.bf16.msra.mxu0 %v1125
      %1417 = vmatpush.bf16.msra.mxu0 %v1121
      %1418 = vmatmul.bf16.gmra.mxu0 %v182
      %v1419 = vpop.f32.mrf.mxu0
      %v1420 = vadd.f32 %v1407, %v1419
      %v1421 = vpop.f32.mrf.mxu0
      %1422 = vdwg.mxu0
      %1423 = vmatpush.bf16.msra.mxu0 %v990
      %1424 = vmatpush.bf16.msra.mxu0 %v986
      %1425 = vmatpush.bf16.msra.mxu0 %v982
      %1426 = vmatpush.bf16.msra.mxu0 %v978
      %1427 = vmatpush.bf16.msra.mxu0 %v974
      %1428 = vmatpush.bf16.msra.mxu0 %v970
      %1429 = vmatpush.bf16.msra.mxu0 %v966
      %1430 = vmatpush.bf16.msra.mxu0 %v962
      %1431 = vmatmul.bf16.gmra.mxu0 %v177
      %v1432 = vpop.f32.mrf.mxu0
      %v1433 = vadd.f32 %v378, %v1432
      %v1434 = vpop.f32.mrf.mxu0
      %1435 = vdwg.mxu0
      %1436 = vmatpush.bf16.msra.mxu0 %v1022
      %1437 = vmatpush.bf16.msra.mxu0 %v1018
      %1438 = vmatpush.bf16.msra.mxu0 %v1014
      %1439 = vmatpush.bf16.msra.mxu0 %v1010
      %1440 = vmatpush.bf16.msra.mxu0 %v1006
      %1441 = vmatpush.bf16.msra.mxu0 %v1002
      %1442 = vmatpush.bf16.msra.mxu0 %v998
      %1443 = vmatpush.bf16.msra.mxu0 %v994
      %1444 = vmatmul.bf16.gmra.mxu0 %v178
      %v1445 = vpop.f32.mrf.mxu0
      %v1446 = vadd.f32 %v1433, %v1445
      %v1447 = vpop.f32.mrf.mxu0
      %1448 = vdwg.mxu0
      %1449 = vmatpush.bf16.msra.mxu0 %v1054
      %1450 = vmatpush.bf16.msra.mxu0 %v1050
      %1451 = vmatpush.bf16.msra.mxu0 %v1046
      %1452 = vmatpush.bf16.msra.mxu0 %v1042
      %1453 = vmatpush.bf16.msra.mxu0 %v1038
      %1454 = vmatpush.bf16.msra.mxu0 %v1034
      %1455 = vmatpush.bf16.msra.mxu0 %v1030
      %1456 = vmatpush.bf16.msra.mxu0 %v1026
      %1457 = vmatmul.bf16.gmra.mxu0 %v179
      %v1458 = vpop.f32.mrf.mxu0
      %v1459 = vadd.f32 %v1446, %v1458
      %v1460 = vpop.f32.mrf.mxu0
      %1461 = vdwg.mxu0
      %1462 = vmatpush.bf16.msra.mxu0 %v1086
      %1463 = vmatpush.bf16.msra.mxu0 %v1082
      %1464 = vmatpush.bf16.msra.mxu0 %v1078
      %1465 = vmatpush.bf16.msra.mxu0 %v1074
      %1466 = vmatpush.bf16.msra.mxu0 %v1070
      %1467 = vmatpush.bf16.msra.mxu0 %v1066
      %1468 = vmatpush.bf16.msra.mxu0 %v1062
      %1469 = vmatpush.bf16.msra.mxu0 %v1058
      %1470 = vmatmul.bf16.gmra.mxu0 %v180
      %v1471 = vpop.f32.mrf.mxu0
      %v1472 = vadd.f32 %v1459, %v1471
      %v1473 = vpop.f32.mrf.mxu0
      %1474 = vdwg.mxu0
      %1475 = vmatpush.bf16.msra.mxu0 %v1118
      %1476 = vmatpush.bf16.msra.mxu0 %v1114
      %1477 = vmatpush.bf16.msra.mxu0 %v1110
      %1478 = vmatpush.bf16.msra.mxu0 %v1106
      %1479 = vmatpush.bf16.msra.mxu0 %v1102
      %1480 = vmatpush.bf16.msra.mxu0 %v1098
      %1481 = vmatpush.bf16.msra.mxu0 %v1094
      %1482 = vmatpush.bf16.msra.mxu0 %v1090
      %1483 = vmatmul.bf16.gmra.mxu0 %v181
      %v1484 = vpop.f32.mrf.mxu0
      %v1485 = vadd.f32 %v1472, %v1484
      %v1486 = vpop.f32.mrf.mxu0
      %1487 = vdwg.mxu0
      %1488 = vmatpush.bf16.msra.mxu0 %v1150
      %1489 = vmatpush.bf16.msra.mxu0 %v1146
      %1490 = vmatpush.bf16.msra.mxu0 %v1142
      %1491 = vmatpush.bf16.msra.mxu0 %v1138
      %1492 = vmatpush.bf16.msra.mxu0 %v1134
      %1493 = vmatpush.bf16.msra.mxu0 %v1130
      %1494 = vmatpush.bf16.msra.mxu0 %v1126
      %1495 = vmatpush.bf16.msra.mxu0 %v1122
      %1496 = vmatmul.bf16.gmra.mxu0 %v182
      %v1497 = vpop.f32.mrf.mxu0
      %v1498 = vadd.f32 %v1485, %v1497
      %v1499 = vpop.f32.mrf.mxu0
      %1500 = vdwg.mxu0
      %1501 = vmatpush.bf16.msra.mxu0 %v991
      %1502 = vmatpush.bf16.msra.mxu0 %v987
      %1503 = vmatpush.bf16.msra.mxu0 %v983
      %1504 = vmatpush.bf16.msra.mxu0 %v979
      %1505 = vmatpush.bf16.msra.mxu0 %v975
      %1506 = vmatpush.bf16.msra.mxu0 %v971
      %1507 = vmatpush.bf16.msra.mxu0 %v967
      %1508 = vmatpush.bf16.msra.mxu0 %v963
      %1509 = vmatmul.bf16.gmra.mxu0 %v177
      %v1510 = vpop.f32.mrf.mxu0
      %v1511 = vadd.f32 %v379, %v1510
      %v1512 = vpop.f32.mrf.mxu0
      %1513 = vdwg.mxu0
      %1514 = vmatpush.bf16.msra.mxu0 %v1023
      %1515 = vmatpush.bf16.msra.mxu0 %v1019
      %1516 = vmatpush.bf16.msra.mxu0 %v1015
      %1517 = vmatpush.bf16.msra.mxu0 %v1011
      %1518 = vmatpush.bf16.msra.mxu0 %v1007
      %1519 = vmatpush.bf16.msra.mxu0 %v1003
      %1520 = vmatpush.bf16.msra.mxu0 %v999
      %1521 = vmatpush.bf16.msra.mxu0 %v995
      %1522 = vmatmul.bf16.gmra.mxu0 %v178
      %v1523 = vpop.f32.mrf.mxu0
      %v1524 = vadd.f32 %v1511, %v1523
      %v1525 = vpop.f32.mrf.mxu0
      %1526 = vdwg.mxu0
      %1527 = vmatpush.bf16.msra.mxu0 %v1055
      %1528 = vmatpush.bf16.msra.mxu0 %v1051
      %1529 = vmatpush.bf16.msra.mxu0 %v1047
      %1530 = vmatpush.bf16.msra.mxu0 %v1043
      %1531 = vmatpush.bf16.msra.mxu0 %v1039
      %1532 = vmatpush.bf16.msra.mxu0 %v1035
      %1533 = vmatpush.bf16.msra.mxu0 %v1031
      %1534 = vmatpush.bf16.msra.mxu0 %v1027
      %1535 = vmatmul.bf16.gmra.mxu0 %v179
      %v1536 = vpop.f32.mrf.mxu0
      %v1537 = vadd.f32 %v1524, %v1536
      %v1538 = vpop.f32.mrf.mxu0
      %1539 = vdwg.mxu0
      %1540 = vmatpush.bf16.msra.mxu0 %v1087
      %1541 = vmatpush.bf16.msra.mxu0 %v1083
      %1542 = vmatpush.bf16.msra.mxu0 %v1079
      %1543 = vmatpush.bf16.msra.mxu0 %v1075
      %1544 = vmatpush.bf16.msra.mxu0 %v1071
      %1545 = vmatpush.bf16.msra.mxu0 %v1067
      %1546 = vmatpush.bf16.msra.mxu0 %v1063
      %1547 = vmatpush.bf16.msra.mxu0 %v1059
      %1548 = vmatmul.bf16.gmra.mxu0 %v180
      %v1549 = vpop.f32.mrf.mxu0
      %v1550 = vadd.f32 %v1537, %v1549
      %v1551 = vpop.f32.mrf.mxu0
      %1552 = vdwg.mxu0
      %1553 = vmatpush.bf16.msra.mxu0 %v1119
      %1554 = vmatpush.bf16.msra.mxu0 %v1115
      %1555 = vmatpush.bf16.msra.mxu0 %v1111
      %1556 = vmatpush.bf16.msra.mxu0 %v1107
      %1557 = vmatpush.bf16.msra.mxu0 %v1103
      %1558 = vmatpush.bf16.msra.mxu0 %v1099
      %1559 = vmatpush.bf16.msra.mxu0 %v1095
      %1560 = vmatpush.bf16.msra.mxu0 %v1091
      %1561 = vmatmul.bf16.gmra.mxu0 %v181
      %v1562 = vpop.f32.mrf.mxu0
      %v1563 = vadd.f32 %v1550, %v1562
      %v1564 = vpop.f32.mrf.mxu0
      %1565 = vdwg.mxu0
      %1566 = vmatpush.bf16.msra.mxu0 %v1151
      %1567 = vmatpush.bf16.msra.mxu0 %v1147
      %1568 = vmatpush.bf16.msra.mxu0 %v1143
      %1569 = vmatpush.bf16.msra.mxu0 %v1139
      %1570 = vmatpush.bf16.msra.mxu0 %v1135
      %1571 = vmatpush.bf16.msra.mxu0 %v1131
      %1572 = vmatpush.bf16.msra.mxu0 %v1127
      %1573 = vmatpush.bf16.msra.mxu0 %v1123
      %1574 = vmatmul.bf16.gmra.mxu0 %v182
      %v1575 = vpop.f32.mrf.mxu0
      %v1576 = vadd.f32 %v1563, %v1575
      %v1577 = vpop.f32.mrf.mxu0
      %1578 = vdwg.mxu0
      %1579 = vmatpush.bf16.msra.mxu0 %v992
      %1580 = vmatpush.bf16.msra.mxu0 %v988
      %1581 = vmatpush.bf16.msra.mxu0 %v984
      %1582 = vmatpush.bf16.msra.mxu0 %v980
      %1583 = vmatpush.bf16.msra.mxu0 %v976
      %1584 = vmatpush.bf16.msra.mxu0 %v972
      %1585 = vmatpush.bf16.msra.mxu0 %v968
      %1586 = vmatpush.bf16.msra.mxu0 %v964
      %1587 = vmatmul.bf16.gmra.mxu0 %v177
      %v1588 = vpop.f32.mrf.mxu0
      %v1589 = vadd.f32 %v380, %v1588
      %v1590 = vpop.f32.mrf.mxu0
      %1591 = vdwg.mxu0
      %1592 = vmatpush.bf16.msra.mxu0 %v1024
      %1593 = vmatpush.bf16.msra.mxu0 %v1020
      %1594 = vmatpush.bf16.msra.mxu0 %v1016
      %1595 = vmatpush.bf16.msra.mxu0 %v1012
      %1596 = vmatpush.bf16.msra.mxu0 %v1008
      %1597 = vmatpush.bf16.msra.mxu0 %v1004
      %1598 = vmatpush.bf16.msra.mxu0 %v1000
      %1599 = vmatpush.bf16.msra.mxu0 %v996
      %1600 = vmatmul.bf16.gmra.mxu0 %v178
      %v1601 = vpop.f32.mrf.mxu0
      %v1602 = vadd.f32 %v1589, %v1601
      %v1603 = vpop.f32.mrf.mxu0
      %1604 = vdwg.mxu0
      %1605 = vmatpush.bf16.msra.mxu0 %v1056
      %1606 = vmatpush.bf16.msra.mxu0 %v1052
      %1607 = vmatpush.bf16.msra.mxu0 %v1048
      %1608 = vmatpush.bf16.msra.mxu0 %v1044
      %1609 = vmatpush.bf16.msra.mxu0 %v1040
      %1610 = vmatpush.bf16.msra.mxu0 %v1036
      %1611 = vmatpush.bf16.msra.mxu0 %v1032
      %1612 = vmatpush.bf16.msra.mxu0 %v1028
      %1613 = vmatmul.bf16.gmra.mxu0 %v179
      %v1614 = vpop.f32.mrf.mxu0
      %v1615 = vadd.f32 %v1602, %v1614
      %v1616 = vpop.f32.mrf.mxu0
      %1617 = vdwg.mxu0
      %1618 = vmatpush.bf16.msra.mxu0 %v1088
      %1619 = vmatpush.bf16.msra.mxu0 %v1084
      %1620 = vmatpush.bf16.msra.mxu0 %v1080
      %1621 = vmatpush.bf16.msra.mxu0 %v1076
      %1622 = vmatpush.bf16.msra.mxu0 %v1072
      %1623 = vmatpush.bf16.msra.mxu0 %v1068
      %1624 = vmatpush.bf16.msra.mxu0 %v1064
      %1625 = vmatpush.bf16.msra.mxu0 %v1060
      %1626 = vmatmul.bf16.gmra.mxu0 %v180
      %v1627 = vpop.f32.mrf.mxu0
      %v1628 = vadd.f32 %v1615, %v1627
      %v1629 = vpop.f32.mrf.mxu0
      %1630 = vdwg.mxu0
      %1631 = vmatpush.bf16.msra.mxu0 %v1120
      %1632 = vmatpush.bf16.msra.mxu0 %v1116
      %1633 = vmatpush.bf16.msra.mxu0 %v1112
      %1634 = vmatpush.bf16.msra.mxu0 %v1108
      %1635 = vmatpush.bf16.msra.mxu0 %v1104
      %1636 = vmatpush.bf16.msra.mxu0 %v1100
      %1637 = vmatpush.bf16.msra.mxu0 %v1096
      %1638 = vmatpush.bf16.msra.mxu0 %v1092
      %1639 = vmatmul.bf16.gmra.mxu0 %v181
      %v1640 = vpop.f32.mrf.mxu0
      %v1641 = vadd.f32 %v1628, %v1640
      %v1642 = vpop.f32.mrf.mxu0
      %1643 = vdwg.mxu0
      %1644 = vmatpush.bf16.msra.mxu0 %v1152
      %1645 = vmatpush.bf16.msra.mxu0 %v1148
      %1646 = vmatpush.bf16.msra.mxu0 %v1144
      %1647 = vmatpush.bf16.msra.mxu0 %v1140
      %1648 = vmatpush.bf16.msra.mxu0 %v1136
      %1649 = vmatpush.bf16.msra.mxu0 %v1132
      %1650 = vmatpush.bf16.msra.mxu0 %v1128
      %1651 = vmatpush.bf16.msra.mxu0 %v1124
      %1652 = vmatmul.bf16.gmra.mxu0 %v182
      %v1653 = vpop.f32.mrf.mxu0
      %v1654 = vadd.f32 %v1641, %v1653
      %v1655 = vpop.f32.mrf.mxu0
      %1656 = vdwg.mxu0
      %v1657 = vpack.c.bf16 %v1498, %v1420
      %v1658 = vpack.c.bf16 %v1654, %v1576
      %1659 = vst [vmem:[%s170] sm:$0xff] %v1657
      %vm1660 = vcmask 1043456
      %vm1661 = vcmask 130052
      %vm1662 = vmor %vm1661, %vm1660
      %1663 = vst.msk [vmem:[%s170 + $0x8] sm:$0xff] %vm1662, %v1658
      %p1664 = scmp.lt.s32.totalorder %s14, 1
      %s1665 = scalar_select %p1664, %s14, 1
      %s1666 = smul.addr %s1665, 4
      %s1667 = smul.addr %s1666, 4
      %s1668 = scalar_lea.vmem %s3, %s1667
      // Predicated region
      $region33: #{mel_head_apply.1} parent=31 // pred_check
        %p1669 = pneg %p100
      $region34: #{mel_head_apply.1} parent=31 // pred_check_branch
        %1671 = sbr.rel (%p1669) target = $region36
      $region35: #{mel_head_apply.1} parent=31 // pred_region
        _
      $region36: #{mel_head_apply.1} parent=31 // pred_fallthru
        _
    $region32: #{mel_head_apply.1} parent=5 // pred_fallthru
      _
    %p1672 = scmp.le.s32.totalorder 2, %s9
    // Predicated region
    $region37: #{mel_head_apply.1} parent=5 // pred_check
      %p1673 = pneg %p1672
    $region38: #{mel_head_apply.1} parent=5 // pred_check_branch
      %1675 = sbr.rel (%p1673) target = $region40
    $region39: #{mel_head_apply.1} parent=5 // pred_region
      %s1676 = ssub.s32 %s9, 2
      // Predicated region
      $region41: #{mel_head_apply.1} parent=39 // pred_check
        %p1677 = pneg %p106
      $region42: #{mel_head_apply.1} parent=39 // pred_check_branch
        %1679 = sbr.rel (%p1677) target = $region44
      $region43: #{mel_head_apply.1} parent=39 // pred_region
        %p1680 = scmp.lt.s32.totalorder %s15, 1
        %s1681 = scalar_select %p1680, %s15, 1
        %s1682 = smul.addr %s1681, 4
        %s1683 = smul.addr %s1682, 4
        %s1684 = scalar_lea.vmem %s3, %s1683
      $region44: #{mel_head_apply.1} parent=39 // pred_fallthru
        _
    $region40: #{mel_head_apply.1} parent=5 // pred_fallthru
      _
  $region6: #{mel_head_apply.1} parent=0 // loop_footer
    %s13 = sadd.s32 1, %s9
  $region7: #{mel_head_apply.1} parent=0 // loop_footer_branch
    %8 = sbr.rel target = $region3
  $region8: #{mel_head_apply.1} parent=0 // loop_exit
    _

</llo_original>
